<compile_context>
chip_gen: v6e
topology: v6e:2x2x1
jax: 0.10.0
libtpu: 0.0.40
codegen_flags: <defaults>
</compile_context>

<pallas_src>
import jax
import jax.numpy as jnp
from jax import lax
from jax.experimental import pallas as pl
from jax.experimental.pallas import tpu as pltpu

# ---------------- problem sizes (small, consistent with the module) ----------------
B = 2     # batch
C = 4     # channels
F = 16    # n_feats (normalized dimension)
T = 16    # time / width
LN_EPS = 1e-5


# ---------------------------------- Pallas kernel ----------------------------------
def cnn_layernorm_kernel(x_ref, g_ref, b_ref, o_ref):
    # x_ref/o_ref: (1, C, F, T) block;  g_ref/b_ref: (1, 1, F, T) (lane-dense).
    x = x_ref[...].astype(jnp.float32)

    # Fused one-pass statistics over the n_feats axis (dim 2).  Both reductions
    # are issued from the same loaded vregs; clamp guards against cancellation
    # (inputs here are O(1), so f32 is plenty).
    mu  = jnp.mean(x,     axis=2, keepdims=True)            # (1, C, 1, T)
    ex2 = jnp.mean(x * x, axis=2, keepdims=True)            # (1, C, 1, T)
    var = jnp.maximum(ex2 - mu * mu, 0.0)

    # Fold gamma into the normalization scale; gamma/beta are already replicated
    # along the lane (T) axis, so these are plain broadcasts/VPU ops.
    scale = lax.rsqrt(var + jnp.float32(LN_EPS)) * g_ref[...]    # (1, C, F, T)

    # Single store, directly in the output dtype (store-lean for v5e).
    o_ref[...] = ((x - mu) * scale + b_ref[...]).astype(o_ref.dtype)


# ---------------------------------- param prep (NOT in the hot path) ----------------
def prepare_params(gamma, beta, t):
    """Done once at parameter-prep time: cast + pre-replicate along the lane axis.

    Returns gamma/beta with shape (1, 1, n_feats, t) so the kernel's affine is a
    rank-matched, lane-dense broadcast (no per-use lane broadcast, no padded
    (F, 1) VMEM buffer).  The extra ~1 KB of DMA is free.
    """
    n_feats = gamma.shape[0]
    g = jnp.broadcast_to(gamma.astype(jnp.float32)[None, None, :, None],
                         (1, 1, n_feats, t))
    b = jnp.broadcast_to(beta.astype(jnp.float32)[None, None, :, None],
                         (1, 1, n_feats, t))
    return g, b


# ---------------------------------- wrapper ----------------------------------
@jax.jit
def cnn_layer_norm(x, gamma_lane, beta_lane):
    """x: (B, C, F, T); gamma_lane/beta_lane: (1, 1, F, T) from prepare_params."""
    b, c, f, t = x.shape
    assert gamma_lane.shape == (1, 1, f, t), gamma_lane.shape
    assert beta_lane.shape == (1, 1, f, t), beta_lane.shape

    # Grid over batch; each block keeps F whole (no accumulator needed) and the
    # "parallel" semantics lets v7x shard grid steps across its 2 TensorCores.
    # For realistic shapes: tile over B*C and T (T tiles a multiple of 128,
    # ~1-8 MiB blocks, double-buffered by BlockSpec) -- never tile F.
    return pl.pallas_call(
        cnn_layernorm_kernel,
        out_shape=jax.ShapeDtypeStruct(x.shape, x.dtype),
        grid=(b,),
        in_specs=[
            pl.BlockSpec((1, c, f, t), lambda i: (i, 0, 0, 0)),
            pl.BlockSpec((1, 1, f, t), lambda i: (0, 0, 0, 0)),
            pl.BlockSpec((1, 1, f, t), lambda i: (0, 0, 0, 0)),
        ],
        out_specs=pl.BlockSpec((1, c, f, t), lambda i: (i, 0, 0, 0)),
        compiler_params=pltpu.CompilerParams(
            dimension_semantics=("parallel",)),
    )(x, gamma_lane, beta_lane)


# ---------------------------------- pure-JAX reference ----------------------------------
def reference(x, gamma, beta):
    # Literal translation of the PyTorch module: transpose(2,3) -> LN -> transpose(2,3)
    xt = jnp.swapaxes(x, 2, 3).astype(jnp.float32)               # (B, C, T, F)
    mu = xt.mean(-1, keepdims=True)
    var = ((xt - mu) ** 2).mean(-1, keepdims=True)
    y = (xt - mu) / jnp.sqrt(var + LN_EPS) * gamma + beta
    return jnp.swapaxes(y, 2, 3).astype(x.dtype)                 # (B, C, F, T)


# ---------------------------------- main ----------------------------------
if __name__ == "__main__":
    key = jax.random.PRNGKey(0)
    k1, k2, k3 = jax.random.split(key, 3)

    x = jax.random.normal(k1, (B, C, F, T), jnp.float32)
    # non-trivial affine params so the gamma/beta path is exercised
    gamma = 1.0 + 0.1 * jax.random.normal(k2, (F,), jnp.float32)
    beta = 0.1 * jax.random.normal(k3, (F,), jnp.float32)

    # Parameter prep happens ONCE, outside the jit'd hot path.
    gamma_lane, beta_lane = prepare_params(gamma, beta, T)

    out = jax.block_until_ready(cnn_layer_norm(x, gamma_lane, beta_lane))
    ref = reference(x, gamma, beta)

    assert out.shape == (B, C, F, T), out.shape
    if not jnp.allclose(out, ref, atol=2e-5, rtol=2e-5):
        raise AssertionError("Pallas CNNLayerNorm output does not match pure-JAX reference")

    print("KERNEL_OK")
</pallas_src>

<mosaic_0001>
module attributes {stable_mosaic.version = 11 : i64} {
  func.func @cnn_layernorm_kernel(%arg0: i32, %arg1: memref<1x4x16x16xf32, #tpu.memory_space<vmem>>, %arg2: memref<1x1x16x16xf32, #tpu.memory_space<vmem>>, %arg3: memref<1x1x16x16xf32, #tpu.memory_space<vmem>>, %arg4: memref<1x4x16x16xf32, #tpu.memory_space<vmem>>) attributes {dimension_semantics = [#tpu.dimension_semantics<parallel>], iteration_bounds = array<i64: 2>, scalar_prefetch = 0 : i64, scratch_operands = 0 : i64, tpu.core_type = #tpu.core_type<tc>, window_params = [{transform_indices = @transform_0, window_bounds = array<i64: 1, 4, 16, 16>}, {pipeline_mode = #tpu.pipeline_mode<synchronous>, transform_indices = @transform_1, window_bounds = array<i64: 1, 1, 16, 16>}, {pipeline_mode = #tpu.pipeline_mode<synchronous>, transform_indices = @transform_2, window_bounds = array<i64: 1, 1, 16, 16>}, {transform_indices = @transform_3, window_bounds = array<i64: 1, 4, 16, 16>}]} {
    %c0 = arith.constant 0 : index
    %c0_0 = arith.constant 0 : index
    %c0_1 = arith.constant 0 : index
    %c0_2 = arith.constant 0 : index
    %0 = vector.load %arg1[%c0, %c0_0, %c0_1, %c0_2] : memref<1x4x16x16xf32, #tpu.memory_space<vmem>>, vector<1x4x16x16xf32>
    %cst = arith.constant dense<0.000000e+00> : vector<1x4x16xf32>
    %1 = vector.multi_reduction <add>, %0, %cst [2] : vector<1x4x16x16xf32> to vector<1x4x16xf32>
    %2 = vector.shape_cast %1 : vector<1x4x16xf32> to vector<1x4x1x16xf32>
    %cst_3 = arith.constant 1.600000e+01 : f32
    %3 = vector.broadcast %cst_3 : f32 to vector<1x4x1x16xf32>
    %4 = arith.divf %2, %3 : vector<1x4x1x16xf32>
    %5 = arith.mulf %0, %0 : vector<1x4x16x16xf32>
    %cst_4 = arith.constant dense<0.000000e+00> : vector<1x4x16xf32>
    %6 = vector.multi_reduction <add>, %5, %cst_4 [2] : vector<1x4x16x16xf32> to vector<1x4x16xf32>
    %7 = vector.shape_cast %6 : vector<1x4x16xf32> to vector<1x4x1x16xf32>
    %cst_5 = arith.constant 1.600000e+01 : f32
    %8 = vector.broadcast %cst_5 : f32 to vector<1x4x1x16xf32>
    %9 = arith.divf %7, %8 : vector<1x4x1x16xf32>
    %10 = arith.mulf %4, %4 : vector<1x4x1x16xf32>
    %11 = arith.subf %9, %10 : vector<1x4x1x16xf32>
    %cst_6 = arith.constant 0.000000e+00 : f32
    %12 = vector.broadcast %cst_6 : f32 to vector<1x4x1x16xf32>
    %13 = arith.maximumf %11, %12 : vector<1x4x1x16xf32>
    %cst_7 = arith.constant 9.99999974E-6 : f32
    %14 = vector.broadcast %cst_7 : f32 to vector<1x4x1x16xf32>
    %15 = arith.addf %13, %14 : vector<1x4x1x16xf32>
    %16 = math.rsqrt %15 : vector<1x4x1x16xf32>
    %c0_8 = arith.constant 0 : index
    %c0_9 = arith.constant 0 : index
    %c0_10 = arith.constant 0 : index
    %c0_11 = arith.constant 0 : index
    %17 = vector.load %arg2[%c0_8, %c0_9, %c0_10, %c0_11] : memref<1x1x16x16xf32, #tpu.memory_space<vmem>>, vector<1x1x16x16xf32>
    %18 = vector.broadcast %16 : vector<1x4x1x16xf32> to vector<1x4x16x16xf32>
    %19 = vector.broadcast %17 : vector<1x1x16x16xf32> to vector<1x4x16x16xf32>
    %20 = arith.mulf %18, %19 : vector<1x4x16x16xf32>
    %21 = vector.broadcast %4 : vector<1x4x1x16xf32> to vector<1x4x16x16xf32>
    %22 = arith.subf %0, %21 : vector<1x4x16x16xf32>
    %23 = arith.mulf %22, %20 : vector<1x4x16x16xf32>
    %c0_12 = arith.constant 0 : index
    %c0_13 = arith.constant 0 : index
    %c0_14 = arith.constant 0 : index
    %c0_15 = arith.constant 0 : index
    %24 = vector.load %arg3[%c0_12, %c0_13, %c0_14, %c0_15] : memref<1x1x16x16xf32, #tpu.memory_space<vmem>>, vector<1x1x16x16xf32>
    %25 = vector.broadcast %24 : vector<1x1x16x16xf32> to vector<1x4x16x16xf32>
    %26 = arith.addf %23, %25 : vector<1x4x16x16xf32>
    %c0_16 = arith.constant 0 : index
    %c0_17 = arith.constant 0 : index
    %c0_18 = arith.constant 0 : index
    %c0_19 = arith.constant 0 : index
    %27 = vector.load %arg4[%c0_16, %c0_17, %c0_18, %c0_19] : memref<1x4x16x16xf32, #tpu.memory_space<vmem>>, vector<1x4x16x16xf32>
    tpu.vector_store %arg4[%c0_16, %c0_17, %c0_18, %c0_19], %26 {strides = array<i32>} : memref<1x4x16x16xf32, #tpu.memory_space<vmem>>, vector<1x4x16x16xf32>,
    return
  }
  func.func @transform_0(%arg0: i32) -> (i32, i32, i32, i32) {
    %c0_i32 = arith.constant 0 : i32
    %c0_i32_0 = arith.constant 0 : i32
    %c0_i32_1 = arith.constant 0 : i32
    %c0_i32_2 = arith.constant 0 : i32
    return %arg0, %c0_i32, %c0_i32_0, %c0_i32_1 : i32, i32, i32, i32
  }
  func.func @transform_1(%arg0: i32) -> (i32, i32, i32, i32) {
    %c0_i32 = arith.constant 0 : i32
    %c0_i32_0 = arith.constant 0 : i32
    %c0_i32_1 = arith.constant 0 : i32
    %c0_i32_2 = arith.constant 0 : i32
    %c0_i32_3 = arith.constant 0 : i32
    return %c0_i32, %c0_i32_0, %c0_i32_1, %c0_i32_2 : i32, i32, i32, i32
  }
  func.func @transform_2(%arg0: i32) -> (i32, i32, i32, i32) {
    %c0_i32 = arith.constant 0 : i32
    %c0_i32_0 = arith.constant 0 : i32
    %c0_i32_1 = arith.constant 0 : i32
    %c0_i32_2 = arith.constant 0 : i32
    %c0_i32_3 = arith.constant 0 : i32
    return %c0_i32, %c0_i32_0, %c0_i32_1, %c0_i32_2 : i32, i32, i32, i32
  }
  func.func @transform_3(%arg0: i32) -> (i32, i32, i32, i32) {
    %c0_i32 = arith.constant 0 : i32
    %c0_i32_0 = arith.constant 0 : i32
    %c0_i32_1 = arith.constant 0 : i32
    %c0_i32_2 = arith.constant 0 : i32
    return %arg0, %c0_i32, %c0_i32_0, %c0_i32_1 : i32, i32, i32, i32
  }
}

</mosaic_0001>

<llo_original>
// kernel: cnn_layer_norm.1
$region0: #{cnn_layer_norm.1}
  #allocation0 [shape = 'u32[]', space=smem, size = 0x4, offset = 0x4, fixed_abs, tag = 'smem constant byte address 0x4 - core index']
  #allocation1 [shape = 'u32[144,128]{1,0:T(1,128)}', space=vmem, size = 0x12000, scoped, tag = 'internal scratch']
  %s0 = inlined_call_operand.hbm [shape: f32[2,4,16,16], index: 0, kind: input, shape index: {}]
  %s1 = inlined_call_operand.hbm [shape: f32[1,1,16,16], index: 1, kind: input, shape index: {}]
  %s2 = inlined_call_operand.hbm [shape: f32[1,1,16,16], index: 2, kind: input, shape index: {}]
  %s3 = inlined_call_operand.hbm [shape: f32[2,4,16,16], index: 3, kind: output, shape index: {}]
  %s4 = sld [smem:[#allocation0]]
  $region57: #{cnn_layer_norm.1} parent=0
    _
  %s6 = ssub.s32 1, %s4
  %s7 = scalar_select 0, %s6, %s4
  $region1: #{cnn_layer_norm.1} parent=0
    #allocation2 [shape = 'u8[65536]{0}', space=vmem, size = 0x10000, scoped, tag = 'input window, operand 0']
    #allocation3 [shape = 's32[2]{0}', space=sflag, size = 0x8, scoped, tag = 'scoped memory for cnn_layer_norm.1']
    #allocation4 [shape = 's32[2]{0}', space=sflag, size = 0x8, scoped, tag = 'scoped memory for cnn_layer_norm.1']
    #allocation5 [shape = 'u8[8192]{0}', space=vmem, size = 0x2000, scoped, tag = 'input window, operand 1, single buffered']
    #allocation6 [shape = 's32[1]{0}', space=sflag, size = 0x4, scoped, tag = 'scoped memory for cnn_layer_norm.1']
    #allocation7 [shape = 'u8[8192]{0}', space=vmem, size = 0x2000, scoped, tag = 'input window, operand 2, single buffered']
    #allocation8 [shape = 'u8[65536]{0}', space=vmem, size = 0x10000, scoped, tag = 'output window, operand 0']
    %8 = vsyncpa [#allocation3], 0
    %s9 = scalar_lea.sflag [#allocation3], 1
    %10 = vsyncpa %s9, 0
    %11 = vsyncpa [#allocation6], 0
    %12 = vsyncpa [#allocation4], 0
    %s13 = scalar_lea.sflag [#allocation4], 1
    %14 = vsyncpa %s13, 0
    loop: start=0, step=1, limit=4
    $region2: #{cnn_layer_norm.1} parent=1 // loop_pre_header
      _
    $region3: #{cnn_layer_norm.1} parent=1 // loop_header
      %s16 = sphi 0, %s20
      %p17 = scmp.ge.s32.totalorder %s16, 4
      %s26 = sphi 0, %s28
      %s29 = sphi 0, %s26
      %s30 = sphi 0, %s29
      %s46 = sphi 0, %s30
      %s50 = sphi 0, %s50
      %s52 = sphi 0, %s50
      %s53 = sphi 0, %s52
      %s67 = sphi 0, %s53
      %s71 = sphi 0, %s71
      %s73 = sphi 0, %s71
      %s74 = sphi 0, %s73
      %s88 = sphi 0, %s74
      %s94 = sphi 0, %s96
      %s97 = sphi 0, %s94
      %s98 = sphi 0, %s97
      %s114 = sphi 0, %s98
    $region4: #{cnn_layer_norm.1} parent=1 // loop_header_branch
      %19 = sbr.rel (%p17) target = $region8
    $region5: #{cnn_layer_norm.1} parent=1 // loop_body
      %s21 = ssub.s32 %s16, 1
      %s22 = ssub.s32 %s16, 2
      %s23 = sadd.s32 %s16, 1
      %s24 = ssub.s32 %s16, %s23
      %p25 = scmp.eq.s32.totalorder %s24, 0
      %s27 = sadd.s32 %s26, 1
      %s28 = scalar_select %p25, %s26, %s27
      %p31 = pneg %p25
      %p32 = scmp.eq.s32.totalorder %s16, 1
      %p33 = por %p31, %p32
      %p34 = scmp.ne.s32.totalorder %s26, %s29
      %p35 = scmp.eq.s32.totalorder %s16, 0
      %p36 = por %p34, %p35
      %p37 = scmp.ne.s32.totalorder %s26, %s29
      %p38 = scmp.eq.s32.totalorder %s21, 1
      %p39 = por %p37, %p38
      %p40 = scmp.ne.s32.totalorder %s29, %s30
      %p41 = scmp.eq.s32.totalorder %s21, 0
      %p42 = por %p40, %p41
      %p43 = scmp.ne.s32.totalorder %s29, %s30
      %p44 = scmp.eq.s32.totalorder %s22, 1
      %p45 = por %p43, %p44
      %p47 = scmp.ne.s32.totalorder %s30, %s46
      %p48 = scmp.eq.s32.totalorder %s22, 0
      %p49 = por %p47, %p48
      %s51 = sadd.s32 %s50, 1
      %p54 = scmp.eq.s32.totalorder %s16, 1
      %p55 = scmp.ne.s32.totalorder %s50, %s52
      %p56 = scmp.eq.s32.totalorder %s16, 0
      %p57 = por %p55, %p56
      %p58 = scmp.ne.s32.totalorder %s50, %s52
      %p59 = scmp.eq.s32.totalorder %s21, 1
      %p60 = por %p58, %p59
      %p61 = scmp.ne.s32.totalorder %s52, %s53
      %p62 = scmp.eq.s32.totalorder %s21, 0
      %p63 = por %p61, %p62
      %p64 = scmp.ne.s32.totalorder %s52, %s53
      %p65 = scmp.eq.s32.totalorder %s22, 1
      %p66 = por %p64, %p65
      %p68 = scmp.ne.s32.totalorder %s53, %s67
      %p69 = scmp.eq.s32.totalorder %s22, 0
      %p70 = por %p68, %p69
      %s72 = sadd.s32 %s71, 1
      %p75 = scmp.eq.s32.totalorder %s16, 1
      %p76 = scmp.ne.s32.totalorder %s71, %s73
      %p77 = scmp.eq.s32.totalorder %s16, 0
      %p78 = por %p76, %p77
      %p79 = scmp.ne.s32.totalorder %s71, %s73
      %p80 = scmp.eq.s32.totalorder %s21, 1
      %p81 = por %p79, %p80
      %p82 = scmp.ne.s32.totalorder %s73, %s74
      %p83 = scmp.eq.s32.totalorder %s21, 0
      %p84 = por %p82, %p83
      %p85 = scmp.ne.s32.totalorder %s73, %s74
      %p86 = scmp.eq.s32.totalorder %s22, 1
      %p87 = por %p85, %p86
      %p89 = scmp.ne.s32.totalorder %s74, %s88
      %p90 = scmp.eq.s32.totalorder %s22, 0
      %p91 = por %p89, %p90
      %s92 = ssub.s32 %s16, %s23
      %p93 = scmp.eq.s32.totalorder %s92, 0
      %s95 = sadd.s32 %s94, 1
      %s96 = scalar_select %p93, %s94, %s95
      %p99 = pneg %p93
      %p100 = scmp.eq.s32.totalorder %s16, 1
      %p101 = por %p99, %p100
      %p102 = scmp.ne.s32.totalorder %s94, %s97
      %p103 = scmp.eq.s32.totalorder %s16, 0
      %p104 = por %p102, %p103
      %p105 = scmp.ne.s32.totalorder %s94, %s97
      %p106 = scmp.eq.s32.totalorder %s21, 1
      %p107 = por %p105, %p106
      %p108 = scmp.ne.s32.totalorder %s97, %s98
      %p109 = scmp.eq.s32.totalorder %s21, 0
      %p110 = por %p108, %p109
      %p111 = scmp.ne.s32.totalorder %s97, %s98
      %p112 = scmp.eq.s32.totalorder %s22, 1
      %p113 = por %p111, %p112
      %p115 = scmp.ne.s32.totalorder %s98, %s114
      %p116 = scmp.eq.s32.totalorder %s22, 0
      %p117 = por %p115, %p116
      %p118 = scmp.le.s32.totalorder 1, %s16
      %p119 = scmp.lt.s32.totalorder %s16, 3
      %p120 = pnand %p118, %p119
      %p121 = pneg %p120
      // Predicated region
      $region9: #{cnn_layer_norm.1} parent=5 // pred_check
        _
      $region10: #{cnn_layer_norm.1} parent=5 // pred_check_branch
        %123 = sbr.rel (%p120) target = $region12
      $region11: #{cnn_layer_norm.1} parent=5 // pred_region
        %s124 = ssub.s32 %s16, 1
        // Predicated region
        $region13: #{cnn_layer_norm.1} parent=11 // pred_check
          %p125 = pneg %p63
        $region14: #{cnn_layer_norm.1} parent=11 // pred_check_branch
          %127 = sbr.rel (%p125) target = $region16
        $region15: #{cnn_layer_norm.1} parent=11 // pred_region
          %s129 = ssub.s32 256, 256
          %130 = vsyncadd [#allocation6], %s129
          %s131 = sshll.u32 [#allocation5], 4
          %s132 = int_to_ptr.vmem [resolvable:$true] %s131
          %137 = dma.hbm_to_vmem [thread:$0]  %s1, 256, %s132, [#allocation6], 128, 128, 8
        $region16: #{cnn_layer_norm.1} parent=11 // pred_fallthru
          _
        // Predicated region
        $region17: #{cnn_layer_norm.1} parent=11 // pred_check
          %p138 = pneg %p84
        $region18: #{cnn_layer_norm.1} parent=11 // pred_check_branch
          %140 = sbr.rel (%p138) target = $region20
        $region19: #{cnn_layer_norm.1} parent=11 // pred_region
          %s142 = ssub.s32 256, 256
          %143 = vsyncadd [#allocation6], %s142
          %s144 = sshll.u32 [#allocation7], 4
          %s145 = int_to_ptr.vmem [resolvable:$true] %s144
          %150 = dma.hbm_to_vmem [thread:$0]  %s2, 256, %s145, [#allocation6], 128, 128, 8
        $region20: #{cnn_layer_norm.1} parent=11 // pred_fallthru
          _
      $region12: #{cnn_layer_norm.1} parent=5 // pred_fallthru
        _
      %p151 = scmp.lt.s32.totalorder %s16, 2
      // Predicated region
      $region21: #{cnn_layer_norm.1} parent=5 // pred_check
        %p152 = pneg %p151
      $region22: #{cnn_layer_norm.1} parent=5 // pred_check_branch
        %154 = sbr.rel (%p152) target = $region24
      $region23: #{cnn_layer_norm.1} parent=5 // pred_region
        // Predicated region
        $region25: #{cnn_layer_norm.1} parent=23 // pred_check
          %p155 = pneg %p36
        $region26: #{cnn_layer_norm.1} parent=23 // pred_check_branch
          %157 = sbr.rel (%p155) target = $region28
        $region27: #{cnn_layer_norm.1} parent=23 // pred_region
          %s158 = sand.u32 %s26, 1
          %s159 = scalar_lea.sflag [#allocation3], %s158
          %s160 = sand.u32 %s26, 1
          %s161 = smul.addr %s160, 64
          %s162 = scalar_lea.vmem [#allocation2], %s161
          %s164 = ssub.s32 1024, 1024
          %165 = vsyncadd %s159, %s164
          %s166 = smul.addr %s16, 8
          %s167 = smul.addr %s166, 128
          %s168 = scalar_lea.hbm %s0, %s167
          %s169 = sshll.u32 %s162, 4
          %s170 = int_to_ptr.vmem [resolvable:$true] %s169
          %175 = dma.hbm_to_vmem [thread:$0]  %s168, 1024, %s170, %s159, 128, 128, 8
        $region28: #{cnn_layer_norm.1} parent=23 // pred_fallthru
          _
      $region24: #{cnn_layer_norm.1} parent=5 // pred_fallthru
        _
      %p176 = scmp.le.s32.totalorder 1, %s16
      %p177 = scmp.lt.s32.totalorder %s16, 3
      %p178 = pnand %p176, %p177
      %p179 = pneg %p178
      // Predicated region
      $region29: #{cnn_layer_norm.1} parent=5 // pred_check
        _
      $region30: #{cnn_layer_norm.1} parent=5 // pred_check_branch
        %181 = sbr.rel (%p178) target = $region32
      $region31: #{cnn_layer_norm.1} parent=5 // pred_region
        %s182 = ssub.s32 %s16, 1
        %s183 = sand.u32 %s29, 1
        %s184 = scalar_lea.sflag [#allocation3], %s183
        %s185 = sand.u32 %s29, 1
        %s186 = smul.addr %s185, 64
        %s187 = scalar_lea.vmem [#allocation2], %s186
        // Predicated region
        $region33: #{cnn_layer_norm.1} parent=31 // pred_check
          %p188 = pneg %p42
        $region34: #{cnn_layer_norm.1} parent=31 // pred_check_branch
          %190 = sbr.rel (%p188) target = $region36
        $region35: #{cnn_layer_norm.1} parent=31 // pred_region
          %191 = dma.done %s184, 1024
        $region36: #{cnn_layer_norm.1} parent=31 // pred_fallthru
          _
        // Predicated region
        $region37: #{cnn_layer_norm.1} parent=31 // pred_check
          %p192 = pneg %p63
        $region38: #{cnn_layer_norm.1} parent=31 // pred_check_branch
          %194 = sbr.rel (%p192) target = $region40
        $region39: #{cnn_layer_norm.1} parent=31 // pred_region
          %195 = dma.done [#allocation6], 256
        $region40: #{cnn_layer_norm.1} parent=31 // pred_fallthru
          _
        // Predicated region
        $region41: #{cnn_layer_norm.1} parent=31 // pred_check
          %p196 = pneg %p84
        $region42: #{cnn_layer_norm.1} parent=31 // pred_check_branch
          %198 = sbr.rel (%p196) target = $region44
        $region43: #{cnn_layer_norm.1} parent=31 // pred_region
          %199 = dma.done [#allocation6], 256
        $region44: #{cnn_layer_norm.1} parent=31 // pred_fallthru
          _
        %s200 = sand.u32 %s29, 1
        %s201 = scalar_lea.sflag [#allocation3], %s200
        %s202 = sand.u32 %s29, 1
        %s203 = smul.addr %s202, 64
        %s204 = scalar_lea.vmem [#allocation2], %s203
        %p205 = pneg %p42
        %p206 = pneg %p39
        %p207 = pneg %p63
        %p208 = pneg %p60
        %p209 = pneg %p84
        %p210 = pneg %p81
        %p211 = pneg %p110
        %p212 = pneg %p107
        %s213 = sand.u32 %s97, 1
        %s214 = scalar_lea.sflag [#allocation4], %s213
        %s215 = sand.u32 %s97, 1
        %s216 = smul.addr %s215, 64
        %s217 = scalar_lea.vmem [#allocation8], %s216
        %v218 = vld [vmem:[%s187] sm:$0xff]
        %v219 = vld [vmem:[%s187 + $0x8] sm:$0xff]
        %v220 = vld [vmem:[%s187 + $0x10] sm:$0xff]
        %v221 = vld [vmem:[%s187 + $0x18] sm:$0xff]
        %v222 = vld [vmem:[%s187 + $0x20] sm:$0xff]
        %v223 = vld [vmem:[%s187 + $0x28] sm:$0xff]
        %v224 = vld [vmem:[%s187 + $0x30] sm:$0xff]
        %v225 = vld [vmem:[%s187 + $0x38] sm:$0xff]
        %vm226 = vcmask 130048
        %v227 = vsel %vm226, %v218, 0.0
        %v228 = vsel %vm226, %v219, 0.0
        %v229 = vadd.f32 %v227, %v228
        %v230 = vrot.slane %v229, 4
        %v231 = vadd.f32 %v229, %v230
        %v232 = vrot.slane %v231, 2
        %v233 = vadd.f32 %v231, %v232
        %v234 = vrot.slane %v233, 1
        %v235 = vadd.f32 %v233, %v234
        %v236 = vsel %vm226, %v220, 0.0
        %v237 = vsel %vm226, %v221, 0.0
        %v238 = vadd.f32 %v236, %v237
        %v239 = vrot.slane %v238, 4
        %v240 = vadd.f32 %v238, %v239
        %v241 = vrot.slane %v240, 2
        %v242 = vadd.f32 %v240, %v241
        %v243 = vrot.slane %v242, 1
        %v244 = vadd.f32 %v242, %v243
        %v245 = vsel %vm226, %v222, 0.0
        %v246 = vsel %vm226, %v223, 0.0
        %v247 = vadd.f32 %v245, %v246
        %v248 = vrot.slane %v247, 4
        %v249 = vadd.f32 %v247, %v248
        %v250 = vrot.slane %v249, 2
        %v251 = vadd.f32 %v249, %v250
        %v252 = vrot.slane %v251, 1
        %v253 = vadd.f32 %v251, %v252
        %v254 = vsel %vm226, %v224, 0.0
        %v255 = vsel %vm226, %v225, 0.0
        %v256 = vadd.f32 %v254, %v255
        %v257 = vrot.slane %v256, 4
        %v258 = vadd.f32 %v256, %v257
        %v259 = vrot.slane %v258, 2
        %v260 = vadd.f32 %v258, %v259
        %v261 = vrot.slane %v260, 1
        %v262 = vadd.f32 %v260, %v261
        %v263 = vrcp.pop 16.0
        %v264 = vmul.f32 %v235, %v263
        %v265 = vmul.f32 %v244, %v263
        %v266 = vmul.f32 %v253, %v263
        %v267 = vmul.f32 %v262, %v263
        %v268 = vmul.f32 %v218, %v218
        %v269 = vmul.f32 %v219, %v219
        %v270 = vmul.f32 %v220, %v220
        %v271 = vmul.f32 %v221, %v221
        %v272 = vmul.f32 %v222, %v222
        %v273 = vmul.f32 %v223, %v223
        %v274 = vmul.f32 %v224, %v224
        %v275 = vmul.f32 %v225, %v225
        %v276 = vsel %vm226, %v268, 0.0
        %v277 = vsel %vm226, %v269, 0.0
        %v278 = vadd.f32 %v276, %v277
        %v279 = vrot.slane %v278, 4
        %v280 = vadd.f32 %v278, %v279
        %v281 = vrot.slane %v280, 2
        %v282 = vadd.f32 %v280, %v281
        %v283 = vrot.slane %v282, 1
        %v284 = vadd.f32 %v282, %v283
        %v285 = vsel %vm226, %v270, 0.0
        %v286 = vsel %vm226, %v271, 0.0
        %v287 = vadd.f32 %v285, %v286
        %v288 = vrot.slane %v287, 4
        %v289 = vadd.f32 %v287, %v288
        %v290 = vrot.slane %v289, 2
        %v291 = vadd.f32 %v289, %v290
        %v292 = vrot.slane %v291, 1
        %v293 = vadd.f32 %v291, %v292
        %v294 = vsel %vm226, %v272, 0.0
        %v295 = vsel %vm226, %v273, 0.0
        %v296 = vadd.f32 %v294, %v295
        %v297 = vrot.slane %v296, 4
        %v298 = vadd.f32 %v296, %v297
        %v299 = vrot.slane %v298, 2
        %v300 = vadd.f32 %v298, %v299
        %v301 = vrot.slane %v300, 1
        %v302 = vadd.f32 %v300, %v301
        %v303 = vsel %vm226, %v274, 0.0
        %v304 = vsel %vm226, %v275, 0.0
        %v305 = vadd.f32 %v303, %v304
        %v306 = vrot.slane %v305, 4
        %v307 = vadd.f32 %v305, %v306
        %v308 = vrot.slane %v307, 2
        %v309 = vadd.f32 %v307, %v308
        %v310 = vrot.slane %v309, 1
        %v311 = vadd.f32 %v309, %v310
        %v312 = vmul.f32 %v284, %v263
        %v313 = vmul.f32 %v293, %v263
        %v314 = vmul.f32 %v302, %v263
        %v315 = vmul.f32 %v311, %v263
        %v316 = vmul.f32 %v264, %v264
        %v317 = vmul.f32 %v265, %v265
        %v318 = vmul.f32 %v266, %v266
        %v319 = vmul.f32 %v267, %v267
        %v320 = vsub.f32 %v312, %v316
        %v321 = vsub.f32 %v313, %v317
        %v322 = vsub.f32 %v314, %v318
        %v323 = vsub.f32 %v315, %v319
        %v324 = vmax.f32 %v320, 0.0
        %v325 = vmax.f32 %v321, 0.0
        %v326 = vmax.f32 %v322, 0.0
        %v327 = vmax.f32 %v323, 0.0
        %v328 = vadd.f32 %v324, 1e-05
        %v329 = vadd.f32 %v325, 1e-05
        %v330 = vadd.f32 %v326, 1e-05
        %v331 = vadd.f32 %v327, 1e-05
        %v332 = vrsqrt.pop %v328
        %v333 = vrsqrt.pop %v329
        %v334 = vrsqrt.pop %v330
        %v335 = vrsqrt.pop %v331
        %v336 = vld [vmem:[#allocation5] sm:$0xff]
        %v337 = vld [vmem:[#allocation5 + $0x8] sm:$0xff]
        %v338 = vmul.f32 %v332, %v336
        %v339 = vmul.f32 %v332, %v337
        %v340 = vmul.f32 %v333, %v336
        %v341 = vmul.f32 %v333, %v337
        %v342 = vmul.f32 %v334, %v336
        %v343 = vmul.f32 %v334, %v337
        %v344 = vmul.f32 %v335, %v336
        %v345 = vmul.f32 %v335, %v337
        %v346 = vsub.f32 %v218, %v264
        %v347 = vsub.f32 %v219, %v264
        %v348 = vsub.f32 %v220, %v265
        %v349 = vsub.f32 %v221, %v265
        %v350 = vsub.f32 %v222, %v266
        %v351 = vsub.f32 %v223, %v266
        %v352 = vsub.f32 %v224, %v267
        %v353 = vsub.f32 %v225, %v267
        %v354 = vmul.f32 %v346, %v338
        %v355 = vmul.f32 %v347, %v339
        %v356 = vmul.f32 %v348, %v340
        %v357 = vmul.f32 %v349, %v341
        %v358 = vmul.f32 %v350, %v342
        %v359 = vmul.f32 %v351, %v343
        %v360 = vmul.f32 %v352, %v344
        %v361 = vmul.f32 %v353, %v345
        %v362 = vld [vmem:[#allocation7] sm:$0xff]
        %v363 = vld [vmem:[#allocation7 + $0x8] sm:$0xff]
        %v364 = vadd.f32 %v354, %v362
        %v365 = vadd.f32 %v355, %v363
        %v366 = vadd.f32 %v356, %v362
        %v367 = vadd.f32 %v357, %v363
        %v368 = vadd.f32 %v358, %v362
        %v369 = vadd.f32 %v359, %v363
        %v370 = vadd.f32 %v360, %v362
        %v371 = vadd.f32 %v361, %v363
        %372 = vst.msk [vmem:[%s217] sm:$0xff] %vm226, %v364
        %373 = vst.msk [vmem:[%s217 + $0x8] sm:$0xff] %vm226, %v365
        %374 = vst.msk [vmem:[%s217 + $0x10] sm:$0xff] %vm226, %v366
        %375 = vst.msk [vmem:[%s217 + $0x18] sm:$0xff] %vm226, %v367
        %376 = vst.msk [vmem:[%s217 + $0x20] sm:$0xff] %vm226, %v368
        %377 = vst.msk [vmem:[%s217 + $0x28] sm:$0xff] %vm226, %v369
        %378 = vst.msk [vmem:[%s217 + $0x30] sm:$0xff] %vm226, %v370
        %379 = vst.msk [vmem:[%s217 + $0x38] sm:$0xff] %vm226, %v371
        %s380 = sand.u32 %s97, 1
        %s381 = scalar_lea.sflag [#allocation4], %s380
        %s382 = sand.u32 %s97, 1
        %s383 = smul.addr %s382, 64
        %s384 = scalar_lea.vmem [#allocation8], %s383
        // Predicated region
        $region45: #{cnn_layer_norm.1} parent=31 // pred_check
          %p385 = pneg %p107
        $region46: #{cnn_layer_norm.1} parent=31 // pred_check_branch
          %387 = sbr.rel (%p385) target = $region48
        $region47: #{cnn_layer_norm.1} parent=31 // pred_region
          %s389 = ssub.s32 1024, 1024
          %390 = vsyncadd %s381, %s389
          %s391 = smul.addr %s21, 8
          %s392 = smul.addr %s391, 128
          %s393 = scalar_lea.hbm %s3, %s392
          %s394 = sshll.u32 %s384, 4
          %s395 = int_to_ptr.vmem [resolvable:$true] %s394
          %400 = dma.vmem_to_hbm [thread:$0]  %s395, 1024, %s393, %s381, 128, 128, 8
        $region48: #{cnn_layer_norm.1} parent=31 // pred_fallthru
          _
      $region32: #{cnn_layer_norm.1} parent=5 // pred_fallthru
        _
      %p401 = scmp.le.s32.totalorder 2, %s16
      // Predicated region
      $region49: #{cnn_layer_norm.1} parent=5 // pred_check
        %p402 = pneg %p401
      $region50: #{cnn_layer_norm.1} parent=5 // pred_check_branch
        %404 = sbr.rel (%p402) target = $region52
      $region51: #{cnn_layer_norm.1} parent=5 // pred_region
        %s405 = ssub.s32 %s16, 2
        // Predicated region
        $region53: #{cnn_layer_norm.1} parent=51 // pred_check
          %p406 = pneg %p113
        $region54: #{cnn_layer_norm.1} parent=51 // pred_check_branch
          %408 = sbr.rel (%p406) target = $region56
        $region55: #{cnn_layer_norm.1} parent=51 // pred_region
          %s409 = sand.u32 %s98, 1
          %s410 = scalar_lea.sflag [#allocation4], %s409
          %s411 = sand.u32 %s98, 1
          %s412 = smul.addr %s411, 64
          %s413 = scalar_lea.vmem [#allocation8], %s412
          %414 = dma.done %s410, 1024
        $region56: #{cnn_layer_norm.1} parent=51 // pred_fallthru
          _
      $region52: #{cnn_layer_norm.1} parent=5 // pred_fallthru
        _
    $region6: #{cnn_layer_norm.1} parent=1 // loop_footer
      %s20 = sadd.s32 1, %s16
    $region7: #{cnn_layer_norm.1} parent=1 // loop_footer_branch
      %15 = sbr.rel target = $region3
    $region8: #{cnn_layer_norm.1} parent=1 // loop_exit
      _
    %415 = vsyncpa [#allocation3], 1
    %s416 = scalar_lea.sflag [#allocation3], 1
    %417 = vsyncpa %s416, 1
    %418 = vsyncpa [#allocation6], 1
    %419 = vsyncpa [#allocation4], 1
    %s420 = scalar_lea.sflag [#allocation4], 1
    %421 = vsyncpa %s420, 1

</llo_original>
